<compile_context>
chip_gen: v7x
topology: tpu7x:2x2x1
jax: 0.10.0
libtpu: 0.0.40
codegen_flags: <defaults>
</compile_context>

<pallas_src>
import jax
import jax.numpy as jnp
from jax.experimental import pallas as pl
from jax.experimental.pallas import tpu as pltpu


_SQRT_HALF = 0.7071067811865476
_BN_EPS = 1e-5


def _gelu_f32(x):
    # Exact (erf-based) GELU, matching nn.GELU() default.
    return 0.5 * x * (1.0 + jax.lax.erf(x * jnp.float32(_SQRT_HALF)))


def _stats_kernel(x_ref, sum_ref, sq_ref):
    """Per-row sum / sum-of-squares of GELU(x) for one (TILE_R, HW) tile."""
    y = _gelu_f32(x_ref[...].astype(jnp.float32))
    sum_ref[...] = jnp.sum(y, axis=1, keepdims=True)
    sq_ref[...] = jnp.sum(y * y, axis=1, keepdims=True)


def _normalize_kernel(x_ref, inv_ref, shift_ref, o_ref):
    """out = GELU(x) * inv[row] + shift[row]  (BatchNorm folded into one FMA)."""
    y = _gelu_f32(x_ref[...].astype(jnp.float32))
    o_ref[...] = (y * inv_ref[...] + shift_ref[...]).astype(o_ref.dtype)


def _pick_tile_rows(rows, hw, target_bytes=2 * 1024 * 1024):
    """Largest row tile (multiple of 8, or the full extent) with <= ~target_bytes of f32 input."""
    cap = max(8, target_bytes // (4 * hw))
    if rows <= cap:
        return rows                      # full extent is always a legal block dim
    return max(8, (int(cap) // 8) * 8)


@jax.jit
def activation_block_forward(x, gamma, beta):
    """GELU -> BatchNorm2d (training-mode batch stats). x: (N, C, H, W) -> (N, C, H, W)."""
    n, c, h, w = x.shape
    hw = h * w
    rows = n * c

    x2 = x.reshape(rows, hw)                       # free reshape of NCHW; lane axis = H*W
    tile_r = _pick_tile_rows(rows, hw)
    grid = (pl.cdiv(rows, tile_r),)

    cparams = pltpu.CompilerParams(
        dimension_semantics=("parallel",),         # shard row tiles across v7x's 2 TensorCores
        vmem_limit_bytes=32 * 1024 * 1024,
    )

    # ---- pass 1: per-row sum / sumsq of GELU(x) ------------------------------------------
    sums, sqs = pl.pallas_call(
        _stats_kernel,
        out_shape=(
            jax.ShapeDtypeStruct((rows, 1), jnp.float32),
            jax.ShapeDtypeStruct((rows, 1), jnp.float32),
        ),
        grid=grid,
        in_specs=[pl.BlockSpec((tile_r, hw), lambda i: (i, 0))],
        out_specs=(
            pl.BlockSpec((tile_r, 1), lambda i: (i, 0)),
            pl.BlockSpec((tile_r, 1), lambda i: (i, 0)),
        ),
        compiler_params=cparams,
        cost_estimate=pl.CostEstimate(
            flops=10 * rows * hw,
            transcendentals=rows * hw,
            bytes_accessed=4 * rows * hw + 8 * rows,
        ),
    )(x2)

    # ---- tiny cross-tile reduction + BN coefficient folding (exact batch statistics) ------
    count = jnp.float32(n * hw)
    ch_sum = jnp.sum(sums.reshape(n, c), axis=0)            # (C,)
    ch_sq = jnp.sum(sqs.reshape(n, c), axis=0)              # (C,)
    mean = ch_sum / count
    var = jnp.maximum(ch_sq / count - mean * mean, 0.0)     # biased variance
    inv = gamma.astype(jnp.float32) * jax.lax.rsqrt(var + jnp.float32(_BN_EPS))
    shift = beta.astype(jnp.float32) - mean * inv

    inv_rows = jnp.tile(inv, n).reshape(rows, 1)             # row r -> channel r % C
    shift_rows = jnp.tile(shift, n).reshape(rows, 1)

    # ---- pass 2: fused GELU + single-FMA BatchNorm sweep -----------------------------------
    out2 = pl.pallas_call(
        _normalize_kernel,
        out_shape=jax.ShapeDtypeStruct((rows, hw), x.dtype),
        grid=grid,
        in_specs=[
            pl.BlockSpec((tile_r, hw), lambda i: (i, 0)),
            pl.BlockSpec((tile_r, 1), lambda i: (i, 0)),
            pl.BlockSpec((tile_r, 1), lambda i: (i, 0)),
        ],
        out_specs=pl.BlockSpec((tile_r, hw), lambda i: (i, 0)),
        compiler_params=cparams,
        cost_estimate=pl.CostEstimate(
            flops=10 * rows * hw,
            transcendentals=rows * hw,
            bytes_accessed=8 * rows * hw + 8 * rows,
        ),
    )(x2, inv_rows, shift_rows)

    return out2.reshape(n, c, h, w)


def _reference(x, gamma, beta):
    """Pure-JAX reference: exact GELU + training-mode BatchNorm2d."""
    y = jax.nn.gelu(x.astype(jnp.float32), approximate=False)
    mean = jnp.mean(y, axis=(0, 2, 3), keepdims=True)
    var = jnp.mean((y - mean) ** 2, axis=(0, 2, 3), keepdims=True)
    y_hat = (y - mean) / jnp.sqrt(var + _BN_EPS)
    return y_hat * gamma[None, :, None, None] + beta[None, :, None, None]


if __name__ == "__main__":
    # Small shapes consistent with the module: NCHW with C = outplane.
    N, C, H, W = 2, 32, 16, 16

    key = jax.random.PRNGKey(0)
    kx, kg, kb = jax.random.split(key, 3)

    x = jax.random.normal(kx, (N, C, H, W), dtype=jnp.float32)
    # Fresh BatchNorm2d has gamma=1, beta=0; perturb slightly to exercise the affine FMA path.
    gamma = 1.0 + 0.1 * jax.random.normal(kg, (C,), dtype=jnp.float32)
    beta = 0.1 * jax.random.normal(kb, (C,), dtype=jnp.float32)

    out = activation_block_forward(x, gamma, beta)
    out = jax.block_until_ready(out)
    assert out.shape == (N, C, H, W), out.shape

    ref = _reference(x, gamma, beta)
    max_err = float(jnp.max(jnp.abs(out - ref)))
    assert jnp.allclose(out, ref, atol=1e-3, rtol=1e-3), max_err

    print("KERNEL_OK")
</pallas_src>

<mosaic_0001>
module attributes {stable_mosaic.version = 11 : i64} {
  func.func @_stats_kernel(%arg0: i32, %arg1: memref<64x256xf32, #tpu.memory_space<vmem>>, %arg2: memref<64x1xf32, #tpu.memory_space<vmem>>, %arg3: memref<64x1xf32, #tpu.memory_space<vmem>>) attributes {dimension_semantics = [#tpu.dimension_semantics<parallel>], iteration_bounds = array<i64: 1>, scalar_prefetch = 0 : i64, scratch_operands = 0 : i64, tpu.core_type = #tpu.core_type<tc>, window_params = [{transform_indices = @transform_0, window_bounds = array<i64: 64, 256>}, {transform_indices = @transform_1, window_bounds = array<i64: 64, 1>}, {transform_indices = @transform_2, window_bounds = array<i64: 64, 1>}]} {
    %c0 = arith.constant 0 : index
    %c0_0 = arith.constant 0 : index
    %0 = vector.load %arg1[%c0, %c0_0] : memref<64x256xf32, #tpu.memory_space<vmem>>, vector<64x256xf32>
    %cst = arith.constant 5.000000e-01 : f32
    %1 = vector.broadcast %cst : f32 to vector<64x256xf32>
    %2 = arith.mulf %1, %0 : vector<64x256xf32>
    %cst_1 = arith.constant 0.707106769 : f32
    %3 = vector.broadcast %cst_1 : f32 to vector<64x256xf32>
    %4 = arith.mulf %0, %3 : vector<64x256xf32>
    %5 = math.erf %4 : vector<64x256xf32>
    %cst_2 = arith.constant 1.000000e+00 : f32
    %6 = vector.broadcast %cst_2 : f32 to vector<64x256xf32>
    %7 = arith.addf %6, %5 : vector<64x256xf32>
    %8 = arith.mulf %2, %7 : vector<64x256xf32>
    %cst_3 = arith.constant dense<0.000000e+00> : vector<64xf32>
    %9 = vector.multi_reduction <add>, %8, %cst_3 [1] : vector<64x256xf32> to vector<64xf32>
    %10 = vector.shape_cast %9 : vector<64xf32> to vector<64x1xf32>
    %c0_4 = arith.constant 0 : index
    %c0_5 = arith.constant 0 : index
    %11 = vector.load %arg2[%c0_4, %c0_5] : memref<64x1xf32, #tpu.memory_space<vmem>>, vector<64x1xf32>
    tpu.vector_store %arg2[%c0_4, %c0_5], %10 {strides = array<i32>} : memref<64x1xf32, #tpu.memory_space<vmem>>, vector<64x1xf32>,
    %12 = arith.mulf %8, %8 : vector<64x256xf32>
    %cst_6 = arith.constant dense<0.000000e+00> : vector<64xf32>
    %13 = vector.multi_reduction <add>, %12, %cst_6 [1] : vector<64x256xf32> to vector<64xf32>
    %14 = vector.shape_cast %13 : vector<64xf32> to vector<64x1xf32>
    %c0_7 = arith.constant 0 : index
    %c0_8 = arith.constant 0 : index
    %15 = vector.load %arg3[%c0_7, %c0_8] : memref<64x1xf32, #tpu.memory_space<vmem>>, vector<64x1xf32>
    tpu.vector_store %arg3[%c0_7, %c0_8], %14 {strides = array<i32>} : memref<64x1xf32, #tpu.memory_space<vmem>>, vector<64x1xf32>,
    return
  }
  func.func @transform_0(%arg0: i32) -> (i32, i32) {
    %c0_i32 = arith.constant 0 : i32
    %c0_i32_0 = arith.constant 0 : i32
    return %arg0, %c0_i32 : i32, i32
  }
  func.func @transform_1(%arg0: i32) -> (i32, i32) {
    %c0_i32 = arith.constant 0 : i32
    %c0_i32_0 = arith.constant 0 : i32
    return %arg0, %c0_i32 : i32, i32
  }
  func.func @transform_2(%arg0: i32) -> (i32, i32) {
    %c0_i32 = arith.constant 0 : i32
    %c0_i32_0 = arith.constant 0 : i32
    return %arg0, %c0_i32 : i32, i32
  }
}

module attributes {stable_mosaic.version = 11 : i64} {
  func.func @_normalize_kernel(%arg0: i32, %arg1: memref<64x256xf32, #tpu.memory_space<vmem>>, %arg2: memref<64x1xf32, #tpu.memory_space<vmem>>, %arg3: memref<64x1xf32, #tpu.memory_space<vmem>>, %arg4: memref<64x256xf32, #tpu.memory_space<vmem>>) attributes {dimension_semantics = [#tpu.dimension_semantics<parallel>], iteration_bounds = array<i64: 1>, scalar_prefetch = 0 : i64, scratch_operands = 0 : i64, tpu.core_type = #tpu.core_type<tc>, window_params = [{transform_indices = @transform_0, window_bounds = array<i64: 64, 256>}, {transform_indices = @transform_1, window_bounds = array<i64: 64, 1>}, {transform_indices = @transform_2, window_bounds = array<i64: 64, 1>}, {transform_indices = @transform_3, window_bounds = array<i64: 64, 256>}]} {
    %c0 = arith.constant 0 : index
    %c0_0 = arith.constant 0 : index
    %0 = vector.load %arg1[%c0, %c0_0] : memref<64x256xf32, #tpu.memory_space<vmem>>, vector<64x256xf32>
    %cst = arith.constant 5.000000e-01 : f32
    %1 = vector.broadcast %cst : f32 to vector<64x256xf32>
    %2 = arith.mulf %1, %0 : vector<64x256xf32>
    %cst_1 = arith.constant 0.707106769 : f32
    %3 = vector.broadcast %cst_1 : f32 to vector<64x256xf32>
    %4 = arith.mulf %0, %3 : vector<64x256xf32>
    %5 = math.erf %4 : vector<64x256xf32>
    %cst_2 = arith.constant 1.000000e+00 : f32
    %6 = vector.broadcast %cst_2 : f32 to vector<64x256xf32>
    %7 = arith.addf %6, %5 : vector<64x256xf32>
    %8 = arith.mulf %2, %7 : vector<64x256xf32>
    %c0_3 = arith.constant 0 : index
    %c0_4 = arith.constant 0 : index
    %9 = vector.load %arg2[%c0_3, %c0_4] : memref<64x1xf32, #tpu.memory_space<vmem>>, vector<64x1xf32>
    %10 = vector.broadcast %9 : vector<64x1xf32> to vector<64x256xf32>
    %11 = arith.mulf %8, %10 : vector<64x256xf32>
    %c0_5 = arith.constant 0 : index
    %c0_6 = arith.constant 0 : index
    %12 = vector.load %arg3[%c0_5, %c0_6] : memref<64x1xf32, #tpu.memory_space<vmem>>, vector<64x1xf32>
    %13 = vector.broadcast %12 : vector<64x1xf32> to vector<64x256xf32>
    %14 = arith.addf %11, %13 : vector<64x256xf32>
    %c0_7 = arith.constant 0 : index
    %c0_8 = arith.constant 0 : index
    %15 = vector.load %arg4[%c0_7, %c0_8] : memref<64x256xf32, #tpu.memory_space<vmem>>, vector<64x256xf32>
    tpu.vector_store %arg4[%c0_7, %c0_8], %14 {strides = array<i32>} : memref<64x256xf32, #tpu.memory_space<vmem>>, vector<64x256xf32>,
    return
  }
  func.func @transform_0(%arg0: i32) -> (i32, i32) {
    %c0_i32 = arith.constant 0 : i32
    %c0_i32_0 = arith.constant 0 : i32
    return %arg0, %c0_i32 : i32, i32
  }
  func.func @transform_1(%arg0: i32) -> (i32, i32) {
    %c0_i32 = arith.constant 0 : i32
    %c0_i32_0 = arith.constant 0 : i32
    return %arg0, %c0_i32 : i32, i32
  }
  func.func @transform_2(%arg0: i32) -> (i32, i32) {
    %c0_i32 = arith.constant 0 : i32
    %c0_i32_0 = arith.constant 0 : i32
    return %arg0, %c0_i32 : i32, i32
  }
  func.func @transform_3(%arg0: i32) -> (i32, i32) {
    %c0_i32 = arith.constant 0 : i32
    %c0_i32_0 = arith.constant 0 : i32
    return %arg0, %c0_i32 : i32, i32
  }
}

</mosaic_0001>

<llo_original>
// kernel: tile.18
$region0: #{tile.18}
  #allocation0 [shape = 's32[1]{0}', space=sflag, size = 0x4, scoped, tag = 'scoped memory for tile.18']
  %s0 = inlined_call_operand.vmem [shape: f32[32], index: 0, kind: input, shape index: {}]
  %s1 = inlined_call_operand.vmem [shape: f32[2,32], index: 1, kind: output, shape index: {}]
  // Predicated region
  $region2: #{tile.18} parent=0 // pred_check
    _
  $region3: #{tile.18} parent=0 // pred_check_branch
    %3 = sbr.rel (0) target = $region5
  $region4: #{tile.18} parent=0 // pred_region
    _
  $region5: #{tile.18} parent=0 // pred_fallthru
    _
  %v4 = vld [vmem:[%s0] ss:$0 sm:$0xff]
  %5 = vst [vmem:[%s1] sm:$0x3] %v4

// kernel: tile.0
$region0: #{tile.0}
  %s0 = inlined_call_operand.vmem [shape: f32[2,32], index: 0, kind: input, shape index: {}]
  %s1 = inlined_call_operand.vmem [shape: f32[64,1], index: 1, kind: output, shape index: {}]
  $region1: #{tile.0} parent=0
    #allocation0 [shape = 'u8[4096]{0}', space=vmem, size = 0x1000, scoped, tag = 'scoped mem for input reshape']
    %s3 = sshllo.u32 0, 2
    %v4 = vld [vmem:[%s0] sm:%s3]
    %5 = vst [vmem:[#allocation0] sm:%s3] %v4
    %v6 = vld [vmem:[#allocation0] sm:$0x3]
    %vm7 = vcmask 7168
    %8 = vst.msk [vmem:[%s1] sm:$0x1] %vm7, %v6
    %s9 = scalar_lea.vmem %s1, 31
    %10 = vst.msk [vmem:[%s9] sm:$0x2] %vm7, %v6
    %v11 = vld [vmem:[#allocation0] sm:$0x3]
    %12 = vrot.lane.b32.xlu0 %v11, 127
    %v13 = vpop.permute.xlu0 %12
    %vm14 = vcmask 7168
    %s15 = scalar_lea.vmem %s1, 1
    %16 = vst.msk [vmem:[%s15] sm:$0x1] %vm14, %v13
    %s17 = scalar_lea.vmem %s1, 32
    %18 = vst.msk [vmem:[%s17] sm:$0x2] %vm14, %v13
    %v19 = vld [vmem:[#allocation0] sm:$0x3]
    %20 = vrot.lane.b32.xlu0 %v19, 126
    %v21 = vpop.permute.xlu0 %20
    %vm22 = vcmask 7168
    %s23 = scalar_lea.vmem %s1, 2
    %24 = vst.msk [vmem:[%s23] sm:$0x1] %vm22, %v21
    %s25 = scalar_lea.vmem %s1, 33
    %26 = vst.msk [vmem:[%s25] sm:$0x2] %vm22, %v21
    %v27 = vld [vmem:[#allocation0] sm:$0x3]
    %28 = vrot.lane.b32.xlu0 %v27, 125
    %v29 = vpop.permute.xlu0 %28
    %vm30 = vcmask 7168
    %s31 = scalar_lea.vmem %s1, 3
    %32 = vst.msk [vmem:[%s31] sm:$0x1] %vm30, %v29
    %s33 = scalar_lea.vmem %s1, 34
    %34 = vst.msk [vmem:[%s33] sm:$0x2] %vm30, %v29
    %v35 = vld [vmem:[#allocation0] sm:$0x3]
    %36 = vrot.lane.b32.xlu0 %v35, 124
    %v37 = vpop.permute.xlu0 %36
    %vm38 = vcmask 7168
    %s39 = scalar_lea.vmem %s1, 4
    %40 = vst.msk [vmem:[%s39] sm:$0x1] %vm38, %v37
    %s41 = scalar_lea.vmem %s1, 35
    %42 = vst.msk [vmem:[%s41] sm:$0x2] %vm38, %v37
    %v43 = vld [vmem:[#allocation0] sm:$0x3]
    %44 = vrot.lane.b32.xlu0 %v43, 123
    %v45 = vpop.permute.xlu0 %44
    %vm46 = vcmask 7168
    %s47 = scalar_lea.vmem %s1, 5
    %48 = vst.msk [vmem:[%s47] sm:$0x1] %vm46, %v45
    %s49 = scalar_lea.vmem %s1, 36
    %50 = vst.msk [vmem:[%s49] sm:$0x2] %vm46, %v45
    %v51 = vld [vmem:[#allocation0] sm:$0x3]
    %52 = vrot.lane.b32.xlu0 %v51, 122
    %v53 = vpop.permute.xlu0 %52
    %vm54 = vcmask 7168
    %s55 = scalar_lea.vmem %s1, 6
    %56 = vst.msk [vmem:[%s55] sm:$0x1] %vm54, %v53
    %s57 = scalar_lea.vmem %s1, 37
    %58 = vst.msk [vmem:[%s57] sm:$0x2] %vm54, %v53
    %v59 = vld [vmem:[#allocation0] sm:$0x3]
    %60 = vrot.lane.b32.xlu0 %v59, 121
    %v61 = vpop.permute.xlu0 %60
    %vm62 = vcmask 7168
    %s63 = scalar_lea.vmem %s1, 7
    %64 = vst.msk [vmem:[%s63] sm:$0x1] %vm62, %v61
    %s65 = scalar_lea.vmem %s1, 38
    %66 = vst.msk [vmem:[%s65] sm:$0x2] %vm62, %v61
    %v67 = vld [vmem:[#allocation0] sm:$0x3]
    %68 = vrot.lane.b32.xlu0 %v67, 120
    %v69 = vpop.permute.xlu0 %68
    %vm70 = vcmask 7168
    %s71 = scalar_lea.vmem %s1, 8
    %72 = vst.msk [vmem:[%s71] sm:$0x1] %vm70, %v69
    %s73 = scalar_lea.vmem %s1, 39
    %74 = vst.msk [vmem:[%s73] sm:$0x2] %vm70, %v69
    %v75 = vld [vmem:[#allocation0] sm:$0x3]
    %76 = vrot.lane.b32.xlu0 %v75, 119
    %v77 = vpop.permute.xlu0 %76
    %vm78 = vcmask 7168
    %s79 = scalar_lea.vmem %s1, 9
    %80 = vst.msk [vmem:[%s79] sm:$0x1] %vm78, %v77
    %s81 = scalar_lea.vmem %s1, 40
    %82 = vst.msk [vmem:[%s81] sm:$0x2] %vm78, %v77
    %v83 = vld [vmem:[#allocation0] sm:$0x3]
    %84 = vrot.lane.b32.xlu0 %v83, 118
    %v85 = vpop.permute.xlu0 %84
    %vm86 = vcmask 7168
    %s87 = scalar_lea.vmem %s1, 10
    %88 = vst.msk [vmem:[%s87] sm:$0x1] %vm86, %v85
    %s89 = scalar_lea.vmem %s1, 41
    %90 = vst.msk [vmem:[%s89] sm:$0x2] %vm86, %v85
    %v91 = vld [vmem:[#allocation0] sm:$0x3]
    %92 = vrot.lane.b32.xlu0 %v91, 117
    %v93 = vpop.permute.xlu0 %92
    %vm94 = vcmask 7168
    %s95 = scalar_lea.vmem %s1, 11
    %96 = vst.msk [vmem:[%s95] sm:$0x1] %vm94, %v93
    %s97 = scalar_lea.vmem %s1, 42
    %98 = vst.msk [vmem:[%s97] sm:$0x2] %vm94, %v93
    %v99 = vld [vmem:[#allocation0] sm:$0x3]
    %100 = vrot.lane.b32.xlu0 %v99, 116
    %v101 = vpop.permute.xlu0 %100
    %vm102 = vcmask 7168
    %s103 = scalar_lea.vmem %s1, 12
    %104 = vst.msk [vmem:[%s103] sm:$0x1] %vm102, %v101
    %s105 = scalar_lea.vmem %s1, 43
    %106 = vst.msk [vmem:[%s105] sm:$0x2] %vm102, %v101
    %v107 = vld [vmem:[#allocation0] sm:$0x3]
    %108 = vrot.lane.b32.xlu0 %v107, 115
    %v109 = vpop.permute.xlu0 %108
    %vm110 = vcmask 7168
    %s111 = scalar_lea.vmem %s1, 13
    %112 = vst.msk [vmem:[%s111] sm:$0x1] %vm110, %v109
    %s113 = scalar_lea.vmem %s1, 44
    %114 = vst.msk [vmem:[%s113] sm:$0x2] %vm110, %v109
    %v115 = vld [vmem:[#allocation0] sm:$0x3]
    %116 = vrot.lane.b32.xlu0 %v115, 114
    %v117 = vpop.permute.xlu0 %116
    %vm118 = vcmask 7168
    %s119 = scalar_lea.vmem %s1, 14
    %120 = vst.msk [vmem:[%s119] sm:$0x1] %vm118, %v117
    %s121 = scalar_lea.vmem %s1, 45
    %122 = vst.msk [vmem:[%s121] sm:$0x2] %vm118, %v117
    %v123 = vld [vmem:[#allocation0] sm:$0x3]
    %124 = vrot.lane.b32.xlu0 %v123, 113
    %v125 = vpop.permute.xlu0 %124
    %vm126 = vcmask 7168
    %s127 = scalar_lea.vmem %s1, 15
    %128 = vst.msk [vmem:[%s127] sm:$0x1] %vm126, %v125
    %s129 = scalar_lea.vmem %s1, 46
    %130 = vst.msk [vmem:[%s129] sm:$0x2] %vm126, %v125
    %v131 = vld [vmem:[#allocation0] sm:$0x3]
    %132 = vrot.lane.b32.xlu0 %v131, 112
    %v133 = vpop.permute.xlu0 %132
    %vm134 = vcmask 7168
    %s135 = scalar_lea.vmem %s1, 16
    %136 = vst.msk [vmem:[%s135] sm:$0x1] %vm134, %v133
    %s137 = scalar_lea.vmem %s1, 47
    %138 = vst.msk [vmem:[%s137] sm:$0x2] %vm134, %v133
    %v139 = vld [vmem:[#allocation0] sm:$0x3]
    %140 = vrot.lane.b32.xlu0 %v139, 111
    %v141 = vpop.permute.xlu0 %140
    %vm142 = vcmask 7168
    %s143 = scalar_lea.vmem %s1, 17
    %144 = vst.msk [vmem:[%s143] sm:$0x1] %vm142, %v141
    %s145 = scalar_lea.vmem %s1, 48
    %146 = vst.msk [vmem:[%s145] sm:$0x2] %vm142, %v141
    %v147 = vld [vmem:[#allocation0] sm:$0x3]
    %148 = vrot.lane.b32.xlu0 %v147, 110
    %v149 = vpop.permute.xlu0 %148
    %vm150 = vcmask 7168
    %s151 = scalar_lea.vmem %s1, 18
    %152 = vst.msk [vmem:[%s151] sm:$0x1] %vm150, %v149
    %s153 = scalar_lea.vmem %s1, 49
    %154 = vst.msk [vmem:[%s153] sm:$0x2] %vm150, %v149
    %v155 = vld [vmem:[#allocation0] sm:$0x3]
    %156 = vrot.lane.b32.xlu0 %v155, 109
    %v157 = vpop.permute.xlu0 %156
    %vm158 = vcmask 7168
    %s159 = scalar_lea.vmem %s1, 19
    %160 = vst.msk [vmem:[%s159] sm:$0x1] %vm158, %v157
    %s161 = scalar_lea.vmem %s1, 50
    %162 = vst.msk [vmem:[%s161] sm:$0x2] %vm158, %v157
    %v163 = vld [vmem:[#allocation0] sm:$0x3]
    %164 = vrot.lane.b32.xlu0 %v163, 108
    %v165 = vpop.permute.xlu0 %164
    %vm166 = vcmask 7168
    %s167 = scalar_lea.vmem %s1, 20
    %168 = vst.msk [vmem:[%s167] sm:$0x1] %vm166, %v165
    %s169 = scalar_lea.vmem %s1, 51
    %170 = vst.msk [vmem:[%s169] sm:$0x2] %vm166, %v165
    %v171 = vld [vmem:[#allocation0] sm:$0x3]
    %172 = vrot.lane.b32.xlu0 %v171, 107
    %v173 = vpop.permute.xlu0 %172
    %vm174 = vcmask 7168
    %s175 = scalar_lea.vmem %s1, 21
    %176 = vst.msk [vmem:[%s175] sm:$0x1] %vm174, %v173
    %s177 = scalar_lea.vmem %s1, 52
    %178 = vst.msk [vmem:[%s177] sm:$0x2] %vm174, %v173
    %v179 = vld [vmem:[#allocation0] sm:$0x3]
    %180 = vrot.lane.b32.xlu0 %v179, 106
    %v181 = vpop.permute.xlu0 %180
    %vm182 = vcmask 7168
    %s183 = scalar_lea.vmem %s1, 22
    %184 = vst.msk [vmem:[%s183] sm:$0x1] %vm182, %v181
    %s185 = scalar_lea.vmem %s1, 53
    %186 = vst.msk [vmem:[%s185] sm:$0x2] %vm182, %v181
    %v187 = vld [vmem:[#allocation0] sm:$0x3]
    %188 = vrot.lane.b32.xlu0 %v187, 105
    %v189 = vpop.permute.xlu0 %188
    %vm190 = vcmask 7168
    %s191 = scalar_lea.vmem %s1, 23
    %192 = vst.msk [vmem:[%s191] sm:$0x1] %vm190, %v189
    %s193 = scalar_lea.vmem %s1, 54
    %194 = vst.msk [vmem:[%s193] sm:$0x2] %vm190, %v189
    %v195 = vld [vmem:[#allocation0] sm:$0x3]
    %196 = vrot.lane.b32.xlu0 %v195, 104
    %v197 = vpop.permute.xlu0 %196
    %vm198 = vcmask 7168
    %s199 = scalar_lea.vmem %s1, 24
    %200 = vst.msk [vmem:[%s199] sm:$0x1] %vm198, %v197
    %s201 = scalar_lea.vmem %s1, 55
    %202 = vst.msk [vmem:[%s201] sm:$0x2] %vm198, %v197
    %v203 = vld [vmem:[#allocation0] sm:$0x3]
    %204 = vrot.lane.b32.xlu0 %v203, 103
    %v205 = vpop.permute.xlu0 %204
    %vm206 = vcmask 7168
    %s207 = scalar_lea.vmem %s1, 25
    %208 = vst.msk [vmem:[%s207] sm:$0x1] %vm206, %v205
    %s209 = scalar_lea.vmem %s1, 56
    %210 = vst.msk [vmem:[%s209] sm:$0x2] %vm206, %v205
    %v211 = vld [vmem:[#allocation0] sm:$0x3]
    %212 = vrot.lane.b32.xlu0 %v211, 102
    %v213 = vpop.permute.xlu0 %212
    %vm214 = vcmask 7168
    %s215 = scalar_lea.vmem %s1, 26
    %216 = vst.msk [vmem:[%s215] sm:$0x1] %vm214, %v213
    %s217 = scalar_lea.vmem %s1, 57
    %218 = vst.msk [vmem:[%s217] sm:$0x2] %vm214, %v213
    %v219 = vld [vmem:[#allocation0] sm:$0x3]
    %220 = vrot.lane.b32.xlu0 %v219, 101
    %v221 = vpop.permute.xlu0 %220
    %vm222 = vcmask 7168
    %s223 = scalar_lea.vmem %s1, 27
    %224 = vst.msk [vmem:[%s223] sm:$0x1] %vm222, %v221
    %s225 = scalar_lea.vmem %s1, 58
    %226 = vst.msk [vmem:[%s225] sm:$0x2] %vm222, %v221
    %v227 = vld [vmem:[#allocation0] sm:$0x3]
    %228 = vrot.lane.b32.xlu0 %v227, 100
    %v229 = vpop.permute.xlu0 %228
    %vm230 = vcmask 7168
    %s231 = scalar_lea.vmem %s1, 28
    %232 = vst.msk [vmem:[%s231] sm:$0x1] %vm230, %v229
    %s233 = scalar_lea.vmem %s1, 59
    %234 = vst.msk [vmem:[%s233] sm:$0x2] %vm230, %v229
    %v235 = vld [vmem:[#allocation0] sm:$0x3]
    %236 = vrot.lane.b32.xlu0 %v235, 99
    %v237 = vpop.permute.xlu0 %236
    %vm238 = vcmask 7168
    %s239 = scalar_lea.vmem %s1, 29
    %240 = vst.msk [vmem:[%s239] sm:$0x1] %vm238, %v237
    %s241 = scalar_lea.vmem %s1, 60
    %242 = vst.msk [vmem:[%s241] sm:$0x2] %vm238, %v237
    %v243 = vld [vmem:[#allocation0] sm:$0x3]
    %244 = vrot.lane.b32.xlu0 %v243, 98
    %v245 = vpop.permute.xlu0 %244
    %vm246 = vcmask 7168
    %s247 = scalar_lea.vmem %s1, 30
    %248 = vst.msk [vmem:[%s247] sm:$0x1] %vm246, %v245
    %s249 = scalar_lea.vmem %s1, 61
    %250 = vst.msk [vmem:[%s249] sm:$0x2] %vm246, %v245
    %v251 = vld [vmem:[#allocation0] sm:$0x3]
    %252 = vrot.lane.b32.xlu0 %v251, 97
    %v253 = vpop.permute.xlu0 %252
    %vm254 = vcmask 7168
    %s255 = scalar_lea.vmem %s1, 31
    %256 = vst.msk [vmem:[%s255] sm:$0x1] %vm254, %v253
    %s257 = scalar_lea.vmem %s1, 62
    %258 = vst.msk [vmem:[%s257] sm:$0x2] %vm254, %v253

// kernel: activation_block_forward.2
$region0: #{activation_block_forward.2}
  #allocation0 [shape = 'u32[]', space=smem, size = 0x4, offset = 0x4, fixed_abs, tag = 'smem constant byte address 0x4 - core index']
  #allocation1 [shape = 'u32[144,128]{1,0:T(1,128)}', space=vmem, size = 0x12000, scoped, tag = 'internal scratch']
  %s0 = inlined_call_operand.vmem [shape: f32[64,256], index: 0, kind: input, shape index: {}]
  %s1 = inlined_call_operand.vmem [shape: f32[64,1], index: 1, kind: output, shape index: {0}]
  %s2 = inlined_call_operand.vmem [shape: f32[64,1], index: 2, kind: output, shape index: {1}]
  %3 = xla_tuple %s1, %s2
  %s4 = sld [smem:[#allocation0]]
  $region22: #{activation_block_forward.2} parent=0
    _
  %s6 = ssub.s32 1, %s4
  %s7 = scalar_select 0, %s6, %s4
  // Predicated region
  $region2: #{activation_block_forward.2} parent=0 // pred_check
    _
  $region3: #{activation_block_forward.2} parent=0 // pred_check_branch
    %9 = sbr.rel (0) target = $region5
  $region4: #{activation_block_forward.2} parent=0 // pred_region
    _
  $region5: #{activation_block_forward.2} parent=0 // pred_fallthru
    _
  %v10 = vld [vmem:[%s0] sm:$0xff]
  %v11 = vld [vmem:[%s0 + $0x8] sm:$0xff]
  %v12 = vld [vmem:[%s0 + $0x10] sm:$0xff]
  %v13 = vld [vmem:[%s0 + $0x18] sm:$0xff]
  %v14 = vld [vmem:[%s0 + $0x20] sm:$0xff]
  %v15 = vld [vmem:[%s0 + $0x28] sm:$0xff]
  %v16 = vld [vmem:[%s0 + $0x30] sm:$0xff]
  %v17 = vld [vmem:[%s0 + $0x38] sm:$0xff]
  %v18 = vld [vmem:[%s0 + $0x40] sm:$0xff]
  %v19 = vld [vmem:[%s0 + $0x48] sm:$0xff]
  %v20 = vld [vmem:[%s0 + $0x50] sm:$0xff]
  %v21 = vld [vmem:[%s0 + $0x58] sm:$0xff]
  %v22 = vld [vmem:[%s0 + $0x60] sm:$0xff]
  %v23 = vld [vmem:[%s0 + $0x68] sm:$0xff]
  %v24 = vld [vmem:[%s0 + $0x70] sm:$0xff]
  %v25 = vld [vmem:[%s0 + $0x78] sm:$0xff]
  %v26 = vmul.f32 %v10, 0.5
  %v27 = vmul.f32 %v11, 0.5
  %v28 = vmul.f32 %v12, 0.5
  %v29 = vmul.f32 %v13, 0.5
  %v30 = vmul.f32 %v14, 0.5
  %v31 = vmul.f32 %v15, 0.5
  %v32 = vmul.f32 %v16, 0.5
  %v33 = vmul.f32 %v17, 0.5
  %v34 = vmul.f32 %v18, 0.5
  %v35 = vmul.f32 %v19, 0.5
  %v36 = vmul.f32 %v20, 0.5
  %v37 = vmul.f32 %v21, 0.5
  %v38 = vmul.f32 %v22, 0.5
  %v39 = vmul.f32 %v23, 0.5
  %v40 = vmul.f32 %v24, 0.5
  %v41 = vmul.f32 %v25, 0.5
  %v42 = vmul.f32 %v10, 0.70710677
  %v43 = vmul.f32 %v11, 0.70710677
  %v44 = vmul.f32 %v12, 0.70710677
  %v45 = vmul.f32 %v13, 0.70710677
  %v46 = vmul.f32 %v14, 0.70710677
  %v47 = vmul.f32 %v15, 0.70710677
  %v48 = vmul.f32 %v16, 0.70710677
  %v49 = vmul.f32 %v17, 0.70710677
  %v50 = vmul.f32 %v18, 0.70710677
  %v51 = vmul.f32 %v19, 0.70710677
  %v52 = vmul.f32 %v20, 0.70710677
  %v53 = vmul.f32 %v21, 0.70710677
  %v54 = vmul.f32 %v22, 0.70710677
  %v55 = vmul.f32 %v23, 0.70710677
  %v56 = vmul.f32 %v24, 0.70710677
  %v57 = vmul.f32 %v25, 0.70710677
  %v58 = verf.f32.pop %v42
  %v59 = verf.f32.pop %v43
  %v60 = verf.f32.pop %v44
  %v61 = verf.f32.pop %v45
  %v62 = verf.f32.pop %v46
  %v63 = verf.f32.pop %v47
  %v64 = verf.f32.pop %v48
  %v65 = verf.f32.pop %v49
  %v66 = verf.f32.pop %v50
  %v67 = verf.f32.pop %v51
  %v68 = verf.f32.pop %v52
  %v69 = verf.f32.pop %v53
  %v70 = verf.f32.pop %v54
  %v71 = verf.f32.pop %v55
  %v72 = verf.f32.pop %v56
  %v73 = verf.f32.pop %v57
  %v74 = vadd.f32 %v58, 1.0
  %v75 = vadd.f32 %v59, 1.0
  %v76 = vadd.f32 %v60, 1.0
  %v77 = vadd.f32 %v61, 1.0
  %v78 = vadd.f32 %v62, 1.0
  %v79 = vadd.f32 %v63, 1.0
  %v80 = vadd.f32 %v64, 1.0
  %v81 = vadd.f32 %v65, 1.0
  %v82 = vadd.f32 %v66, 1.0
  %v83 = vadd.f32 %v67, 1.0
  %v84 = vadd.f32 %v68, 1.0
  %v85 = vadd.f32 %v69, 1.0
  %v86 = vadd.f32 %v70, 1.0
  %v87 = vadd.f32 %v71, 1.0
  %v88 = vadd.f32 %v72, 1.0
  %v89 = vadd.f32 %v73, 1.0
  %v90 = vmul.f32 %v26, %v74
  %v91 = vmul.f32 %v27, %v75
  %v92 = vmul.f32 %v28, %v76
  %v93 = vmul.f32 %v29, %v77
  %v94 = vmul.f32 %v30, %v78
  %v95 = vmul.f32 %v31, %v79
  %v96 = vmul.f32 %v32, %v80
  %v97 = vmul.f32 %v33, %v81
  %v98 = vmul.f32 %v34, %v82
  %v99 = vmul.f32 %v35, %v83
  %v100 = vmul.f32 %v36, %v84
  %v101 = vmul.f32 %v37, %v85
  %v102 = vmul.f32 %v38, %v86
  %v103 = vmul.f32 %v39, %v87
  %v104 = vmul.f32 %v40, %v88
  %v105 = vmul.f32 %v41, %v89
  %v106 = vadd.f32 %v90, %v91
  %107 = vadd.xlane.f32.xlu0 %v106
  %v108 = vpop.xlane.xlu0 %107
  %v109 = vadd.f32 %v92, %v93
  %110 = vadd.xlane.f32.xlu0 %v109
  %v111 = vpop.xlane.xlu0 %110
  %v112 = vadd.f32 %v94, %v95
  %113 = vadd.xlane.f32.xlu0 %v112
  %v114 = vpop.xlane.xlu0 %113
  %v115 = vadd.f32 %v96, %v97
  %116 = vadd.xlane.f32.xlu0 %v115
  %v117 = vpop.xlane.xlu0 %116
  %v118 = vadd.f32 %v98, %v99
  %119 = vadd.xlane.f32.xlu0 %v118
  %v120 = vpop.xlane.xlu0 %119
  %v121 = vadd.f32 %v100, %v101
  %122 = vadd.xlane.f32.xlu0 %v121
  %v123 = vpop.xlane.xlu0 %122
  %v124 = vadd.f32 %v102, %v103
  %125 = vadd.xlane.f32.xlu0 %v124
  %v126 = vpop.xlane.xlu0 %125
  %v127 = vadd.f32 %v104, %v105
  %128 = vadd.xlane.f32.xlu0 %v127
  %v129 = vpop.xlane.xlu0 %128
  %vm130 = vcmask 7168
  %131 = vst.msk [vmem:[%s1] sm:$0xff] %vm130, %v108
  %132 = vst.msk [vmem:[%s1 + $0x8] sm:$0xff] %vm130, %v111
  %133 = vst.msk [vmem:[%s1 + $0x10] sm:$0xff] %vm130, %v114
  %134 = vst.msk [vmem:[%s1 + $0x18] sm:$0xff] %vm130, %v117
  %135 = vst.msk [vmem:[%s1 + $0x20] sm:$0xff] %vm130, %v120
  %136 = vst.msk [vmem:[%s1 + $0x28] sm:$0xff] %vm130, %v123
  %137 = vst.msk [vmem:[%s1 + $0x30] sm:$0xff] %vm130, %v126
  %138 = vst.msk [vmem:[%s1 + $0x38] sm:$0xff] %vm130, %v129
  %v139 = vmul.f32 %v90, %v90
  %v140 = vmul.f32 %v91, %v91
  %v141 = vmul.f32 %v92, %v92
  %v142 = vmul.f32 %v93, %v93
  %v143 = vmul.f32 %v94, %v94
  %v144 = vmul.f32 %v95, %v95
  %v145 = vmul.f32 %v96, %v96
  %v146 = vmul.f32 %v97, %v97
  %v147 = vmul.f32 %v98, %v98
  %v148 = vmul.f32 %v99, %v99
  %v149 = vmul.f32 %v100, %v100
  %v150 = vmul.f32 %v101, %v101
  %v151 = vmul.f32 %v102, %v102
  %v152 = vmul.f32 %v103, %v103
  %v153 = vmul.f32 %v104, %v104
  %v154 = vmul.f32 %v105, %v105
  %v155 = vadd.f32 %v139, %v140
  %156 = vadd.xlane.f32.xlu0 %v155
  %v157 = vpop.xlane.xlu0 %156
  %v158 = vadd.f32 %v141, %v142
  %159 = vadd.xlane.f32.xlu0 %v158
  %v160 = vpop.xlane.xlu0 %159
  %v161 = vadd.f32 %v143, %v144
  %162 = vadd.xlane.f32.xlu0 %v161
  %v163 = vpop.xlane.xlu0 %162
  %v164 = vadd.f32 %v145, %v146
  %165 = vadd.xlane.f32.xlu0 %v164
  %v166 = vpop.xlane.xlu0 %165
  %v167 = vadd.f32 %v147, %v148
  %168 = vadd.xlane.f32.xlu0 %v167
  %v169 = vpop.xlane.xlu0 %168
  %v170 = vadd.f32 %v149, %v150
  %171 = vadd.xlane.f32.xlu0 %v170
  %v172 = vpop.xlane.xlu0 %171
  %v173 = vadd.f32 %v151, %v152
  %174 = vadd.xlane.f32.xlu0 %v173
  %v175 = vpop.xlane.xlu0 %174
  %v176 = vadd.f32 %v153, %v154
  %177 = vadd.xlane.f32.xlu0 %v176
  %v178 = vpop.xlane.xlu0 %177
  %179 = vst.msk [vmem:[%s2] sm:$0xff] %vm130, %v157
  %180 = vst.msk [vmem:[%s2 + $0x8] sm:$0xff] %vm130, %v160
  %181 = vst.msk [vmem:[%s2 + $0x10] sm:$0xff] %vm130, %v163
  %182 = vst.msk [vmem:[%s2 + $0x18] sm:$0xff] %vm130, %v166
  %183 = vst.msk [vmem:[%s2 + $0x20] sm:$0xff] %vm130, %v169
  %184 = vst.msk [vmem:[%s2 + $0x28] sm:$0xff] %vm130, %v172
  %185 = vst.msk [vmem:[%s2 + $0x30] sm:$0xff] %vm130, %v175
  %186 = vst.msk [vmem:[%s2 + $0x38] sm:$0xff] %vm130, %v178
  // Predicated region
  $region6: #{activation_block_forward.2} parent=0 // pred_check
    _
  $region7: #{activation_block_forward.2} parent=0 // pred_check_branch
    %188 = sbr.rel (0) target = $region9
  $region8: #{activation_block_forward.2} parent=0 // pred_region
    _
  $region9: #{activation_block_forward.2} parent=0 // pred_fallthru
    _
  // Predicated region
  $region10: #{activation_block_forward.2} parent=0 // pred_check
    _
  $region11: #{activation_block_forward.2} parent=0 // pred_check_branch
    %190 = sbr.rel (0) target = $region13
  $region12: #{activation_block_forward.2} parent=0 // pred_region
    _
  $region13: #{activation_block_forward.2} parent=0 // pred_fallthru
    _
  // Predicated region
  $region14: #{activation_block_forward.2} parent=0 // pred_check
    _
  $region15: #{activation_block_forward.2} parent=0 // pred_check_branch
    %192 = sbr.rel (0) target = $region17
  $region16: #{activation_block_forward.2} parent=0 // pred_region
    _
  $region17: #{activation_block_forward.2} parent=0 // pred_fallthru
    _
  // Predicated region
  $region18: #{activation_block_forward.2} parent=0 // pred_check
    _
  $region19: #{activation_block_forward.2} parent=0 // pred_check_branch
    %194 = sbr.rel (0) target = $region21
  $region20: #{activation_block_forward.2} parent=0 // pred_region
    _
  $region21: #{activation_block_forward.2} parent=0 // pred_fallthru
    _

// kernel: activation_block_forward.3
$region0: #{activation_block_forward.3}
  #allocation0 [shape = 'u32[]', space=smem, size = 0x4, offset = 0x4, fixed_abs, tag = 'smem constant byte address 0x4 - core index']
  #allocation1 [shape = 'u32[144,128]{1,0:T(1,128)}', space=vmem, size = 0x12000, scoped, tag = 'internal scratch']
  %s0 = inlined_call_operand.vmem [shape: f32[64,256], index: 0, kind: input, shape index: {}]
  %s1 = inlined_call_operand.vmem [shape: f32[64,1], index: 1, kind: input, shape index: {}]
  %s2 = inlined_call_operand.vmem [shape: f32[64,1], index: 2, kind: input, shape index: {}]
  %s3 = inlined_call_operand.vmem [shape: f32[64,256], index: 3, kind: output, shape index: {}]
  %s4 = sld [smem:[#allocation0]]
  $region22: #{activation_block_forward.3} parent=0
    _
  %s6 = ssub.s32 1, %s4
  %s7 = scalar_select 0, %s6, %s4
  // Predicated region
  $region2: #{activation_block_forward.3} parent=0 // pred_check
    _
  $region3: #{activation_block_forward.3} parent=0 // pred_check_branch
    %9 = sbr.rel (0) target = $region5
  $region4: #{activation_block_forward.3} parent=0 // pred_region
    _
  $region5: #{activation_block_forward.3} parent=0 // pred_fallthru
    _
  // Predicated region
  $region6: #{activation_block_forward.3} parent=0 // pred_check
    _
  $region7: #{activation_block_forward.3} parent=0 // pred_check_branch
    %11 = sbr.rel (0) target = $region9
  $region8: #{activation_block_forward.3} parent=0 // pred_region
    _
  $region9: #{activation_block_forward.3} parent=0 // pred_fallthru
    _
  // Predicated region
  $region10: #{activation_block_forward.3} parent=0 // pred_check
    _
  $region11: #{activation_block_forward.3} parent=0 // pred_check_branch
    %13 = sbr.rel (0) target = $region13
  $region12: #{activation_block_forward.3} parent=0 // pred_region
    _
  $region13: #{activation_block_forward.3} parent=0 // pred_fallthru
    _
  %v14 = vld [vmem:[%s0] sm:$0xff]
  %v15 = vld [vmem:[%s0 + $0x8] sm:$0xff]
  %v16 = vld [vmem:[%s0 + $0x10] sm:$0xff]
  %v17 = vld [vmem:[%s0 + $0x18] sm:$0xff]
  %v18 = vld [vmem:[%s0 + $0x20] sm:$0xff]
  %v19 = vld [vmem:[%s0 + $0x28] sm:$0xff]
  %v20 = vld [vmem:[%s0 + $0x30] sm:$0xff]
  %v21 = vld [vmem:[%s0 + $0x38] sm:$0xff]
  %v22 = vld [vmem:[%s0 + $0x40] sm:$0xff]
  %v23 = vld [vmem:[%s0 + $0x48] sm:$0xff]
  %v24 = vld [vmem:[%s0 + $0x50] sm:$0xff]
  %v25 = vld [vmem:[%s0 + $0x58] sm:$0xff]
  %v26 = vld [vmem:[%s0 + $0x60] sm:$0xff]
  %v27 = vld [vmem:[%s0 + $0x68] sm:$0xff]
  %v28 = vld [vmem:[%s0 + $0x70] sm:$0xff]
  %v29 = vld [vmem:[%s0 + $0x78] sm:$0xff]
  %v30 = vmul.f32 %v14, 0.5
  %v31 = vmul.f32 %v15, 0.5
  %v32 = vmul.f32 %v16, 0.5
  %v33 = vmul.f32 %v17, 0.5
  %v34 = vmul.f32 %v18, 0.5
  %v35 = vmul.f32 %v19, 0.5
  %v36 = vmul.f32 %v20, 0.5
  %v37 = vmul.f32 %v21, 0.5
  %v38 = vmul.f32 %v22, 0.5
  %v39 = vmul.f32 %v23, 0.5
  %v40 = vmul.f32 %v24, 0.5
  %v41 = vmul.f32 %v25, 0.5
  %v42 = vmul.f32 %v26, 0.5
  %v43 = vmul.f32 %v27, 0.5
  %v44 = vmul.f32 %v28, 0.5
  %v45 = vmul.f32 %v29, 0.5
  %v46 = vmul.f32 %v14, 0.70710677
  %v47 = vmul.f32 %v15, 0.70710677
  %v48 = vmul.f32 %v16, 0.70710677
  %v49 = vmul.f32 %v17, 0.70710677
  %v50 = vmul.f32 %v18, 0.70710677
  %v51 = vmul.f32 %v19, 0.70710677
  %v52 = vmul.f32 %v20, 0.70710677
  %v53 = vmul.f32 %v21, 0.70710677
  %v54 = vmul.f32 %v22, 0.70710677
  %v55 = vmul.f32 %v23, 0.70710677
  %v56 = vmul.f32 %v24, 0.70710677
  %v57 = vmul.f32 %v25, 0.70710677
  %v58 = vmul.f32 %v26, 0.70710677
  %v59 = vmul.f32 %v27, 0.70710677
  %v60 = vmul.f32 %v28, 0.70710677
  %v61 = vmul.f32 %v29, 0.70710677
  %v62 = verf.f32.pop %v46
  %v63 = verf.f32.pop %v47
  %v64 = verf.f32.pop %v48
  %v65 = verf.f32.pop %v49
  %v66 = verf.f32.pop %v50
  %v67 = verf.f32.pop %v51
  %v68 = verf.f32.pop %v52
  %v69 = verf.f32.pop %v53
  %v70 = verf.f32.pop %v54
  %v71 = verf.f32.pop %v55
  %v72 = verf.f32.pop %v56
  %v73 = verf.f32.pop %v57
  %v74 = verf.f32.pop %v58
  %v75 = verf.f32.pop %v59
  %v76 = verf.f32.pop %v60
  %v77 = verf.f32.pop %v61
  %v78 = vadd.f32 %v62, 1.0
  %v79 = vadd.f32 %v63, 1.0
  %v80 = vadd.f32 %v64, 1.0
  %v81 = vadd.f32 %v65, 1.0
  %v82 = vadd.f32 %v66, 1.0
  %v83 = vadd.f32 %v67, 1.0
  %v84 = vadd.f32 %v68, 1.0
  %v85 = vadd.f32 %v69, 1.0
  %v86 = vadd.f32 %v70, 1.0
  %v87 = vadd.f32 %v71, 1.0
  %v88 = vadd.f32 %v72, 1.0
  %v89 = vadd.f32 %v73, 1.0
  %v90 = vadd.f32 %v74, 1.0
  %v91 = vadd.f32 %v75, 1.0
  %v92 = vadd.f32 %v76, 1.0
  %v93 = vadd.f32 %v77, 1.0
  %v94 = vmul.f32 %v30, %v78
  %v95 = vmul.f32 %v31, %v79
  %v96 = vmul.f32 %v32, %v80
  %v97 = vmul.f32 %v33, %v81
  %v98 = vmul.f32 %v34, %v82
  %v99 = vmul.f32 %v35, %v83
  %v100 = vmul.f32 %v36, %v84
  %v101 = vmul.f32 %v37, %v85
  %v102 = vmul.f32 %v38, %v86
  %v103 = vmul.f32 %v39, %v87
  %v104 = vmul.f32 %v40, %v88
  %v105 = vmul.f32 %v41, %v89
  %v106 = vmul.f32 %v42, %v90
  %v107 = vmul.f32 %v43, %v91
  %v108 = vmul.f32 %v44, %v92
  %v109 = vmul.f32 %v45, %v93
  %v110 = vld [vmem:[%s1] sm:$0xff]
  %v111 = vld [vmem:[%s1 + $0x8] sm:$0xff]
  %v112 = vld [vmem:[%s1 + $0x10] sm:$0xff]
  %v113 = vld [vmem:[%s1 + $0x18] sm:$0xff]
  %v114 = vld [vmem:[%s1 + $0x20] sm:$0xff]
  %v115 = vld [vmem:[%s1 + $0x28] sm:$0xff]
  %v116 = vld [vmem:[%s1 + $0x30] sm:$0xff]
  %v117 = vld [vmem:[%s1 + $0x38] sm:$0xff]
  %119 = vset.pattern.permute.xlu0 0
  %120 = vperm.xlu0 %119, %v110
  %v121 = vpop.permute.xlu0 %120
  %124 = vset.pattern.permute.xlu0 0
  %125 = vperm.xlu0 %124, %v111
  %v126 = vpop.permute.xlu0 %125
  %129 = vset.pattern.permute.xlu0 0
  %130 = vperm.xlu0 %129, %v112
  %v131 = vpop.permute.xlu0 %130
  %134 = vset.pattern.permute.xlu0 0
  %135 = vperm.xlu0 %134, %v113
  %v136 = vpop.permute.xlu0 %135
  %139 = vset.pattern.permute.xlu0 0
  %140 = vperm.xlu0 %139, %v114
  %v141 = vpop.permute.xlu0 %140
  %144 = vset.pattern.permute.xlu0 0
  %145 = vperm.xlu0 %144, %v115
  %v146 = vpop.permute.xlu0 %145
  %149 = vset.pattern.permute.xlu0 0
  %150 = vperm.xlu0 %149, %v116
  %v151 = vpop.permute.xlu0 %150
  %154 = vset.pattern.permute.xlu0 0
  %155 = vperm.xlu0 %154, %v117
  %v156 = vpop.permute.xlu0 %155
  %v158 = vmul.f32 %v94, %v121
  %v159 = vmul.f32 %v95, %v121
  %v160 = vmul.f32 %v96, %v126
  %v161 = vmul.f32 %v97, %v126
  %v162 = vmul.f32 %v98, %v131
  %v163 = vmul.f32 %v99, %v131
  %v164 = vmul.f32 %v100, %v136
  %v165 = vmul.f32 %v101, %v136
  %v166 = vmul.f32 %v102, %v141
  %v167 = vmul.f32 %v103, %v141
  %v168 = vmul.f32 %v104, %v146
  %v169 = vmul.f32 %v105, %v146
  %v170 = vmul.f32 %v106, %v151
  %v171 = vmul.f32 %v107, %v151
  %v172 = vmul.f32 %v108, %v156
  %v173 = vmul.f32 %v109, %v156
  %v174 = vld [vmem:[%s2] sm:$0xff]
  %v175 = vld [vmem:[%s2 + $0x8] sm:$0xff]
  %v176 = vld [vmem:[%s2 + $0x10] sm:$0xff]
  %v177 = vld [vmem:[%s2 + $0x18] sm:$0xff]
  %v178 = vld [vmem:[%s2 + $0x20] sm:$0xff]
  %v179 = vld [vmem:[%s2 + $0x28] sm:$0xff]
  %v180 = vld [vmem:[%s2 + $0x30] sm:$0xff]
  %v181 = vld [vmem:[%s2 + $0x38] sm:$0xff]
  %183 = vset.pattern.permute.xlu0 0
  %184 = vperm.xlu0 %183, %v174
  %v185 = vpop.permute.xlu0 %184
  %188 = vset.pattern.permute.xlu0 0
  %189 = vperm.xlu0 %188, %v175
  %v190 = vpop.permute.xlu0 %189
  %193 = vset.pattern.permute.xlu0 0
  %194 = vperm.xlu0 %193, %v176
  %v195 = vpop.permute.xlu0 %194
  %198 = vset.pattern.permute.xlu0 0
  %199 = vperm.xlu0 %198, %v177
  %v200 = vpop.permute.xlu0 %199
  %203 = vset.pattern.permute.xlu0 0
  %204 = vperm.xlu0 %203, %v178
  %v205 = vpop.permute.xlu0 %204
  %208 = vset.pattern.permute.xlu0 0
  %209 = vperm.xlu0 %208, %v179
  %v210 = vpop.permute.xlu0 %209
  %213 = vset.pattern.permute.xlu0 0
  %214 = vperm.xlu0 %213, %v180
  %v215 = vpop.permute.xlu0 %214
  %218 = vset.pattern.permute.xlu0 0
  %219 = vperm.xlu0 %218, %v181
  %v220 = vpop.permute.xlu0 %219
  %v222 = vadd.f32 %v158, %v185
  %v223 = vadd.f32 %v159, %v185
  %v224 = vadd.f32 %v160, %v190
  %v225 = vadd.f32 %v161, %v190
  %v226 = vadd.f32 %v162, %v195
  %v227 = vadd.f32 %v163, %v195
  %v228 = vadd.f32 %v164, %v200
  %v229 = vadd.f32 %v165, %v200
  %v230 = vadd.f32 %v166, %v205
  %v231 = vadd.f32 %v167, %v205
  %v232 = vadd.f32 %v168, %v210
  %v233 = vadd.f32 %v169, %v210
  %v234 = vadd.f32 %v170, %v215
  %v235 = vadd.f32 %v171, %v215
  %v236 = vadd.f32 %v172, %v220
  %v237 = vadd.f32 %v173, %v220
  %238 = vst [vmem:[%s3] sm:$0xff] %v222
  %239 = vst [vmem:[%s3 + $0x8] sm:$0xff] %v223
  %240 = vst [vmem:[%s3 + $0x10] sm:$0xff] %v224
  %241 = vst [vmem:[%s3 + $0x18] sm:$0xff] %v225
  %242 = vst [vmem:[%s3 + $0x20] sm:$0xff] %v226
  %243 = vst [vmem:[%s3 + $0x28] sm:$0xff] %v227
  %244 = vst [vmem:[%s3 + $0x30] sm:$0xff] %v228
  %245 = vst [vmem:[%s3 + $0x38] sm:$0xff] %v229
  %246 = vst [vmem:[%s3 + $0x40] sm:$0xff] %v230
  %247 = vst [vmem:[%s3 + $0x48] sm:$0xff] %v231
  %248 = vst [vmem:[%s3 + $0x50] sm:$0xff] %v232
  %249 = vst [vmem:[%s3 + $0x58] sm:$0xff] %v233
  %250 = vst [vmem:[%s3 + $0x60] sm:$0xff] %v234
  %251 = vst [vmem:[%s3 + $0x68] sm:$0xff] %v235
  %252 = vst [vmem:[%s3 + $0x70] sm:$0xff] %v236
  %253 = vst [vmem:[%s3 + $0x78] sm:$0xff] %v237
  // Predicated region
  $region14: #{activation_block_forward.3} parent=0 // pred_check
    _
  $region15: #{activation_block_forward.3} parent=0 // pred_check_branch
    %255 = sbr.rel (0) target = $region17
  $region16: #{activation_block_forward.3} parent=0 // pred_region
    _
  $region17: #{activation_block_forward.3} parent=0 // pred_fallthru
    _
  // Predicated region
  $region18: #{activation_block_forward.3} parent=0 // pred_check
    _
  $region19: #{activation_block_forward.3} parent=0 // pred_check_branch
    %257 = sbr.rel (0) target = $region21
  $region20: #{activation_block_forward.3} parent=0 // pred_region
    _
  $region21: #{activation_block_forward.3} parent=0 // pred_fallthru
    _

</llo_original>
